<compile_context>
chip_gen: v7x
topology: tpu7x:2x2x1
jax: 0.10.0
libtpu: 0.0.40
codegen_flags: <defaults>
</compile_context>

<pallas_src>
import functools

import numpy as np
import jax
import jax.numpy as jnp
from jax.experimental import pallas as pl
from jax.experimental.pallas import tpu as pltpu

SMOOTH_NR = 1e-5  # MONAI DiceLoss defaults
SMOOTH_DR = 1e-5

_LANES = 128
_NQ = 4  # rows of the packed per-(n, c) table
_ROW_INTER, _ROW_GO, _ROW_PO, _ROW_CE = 0, 1, 2, 3

_MIN_TILE_ROWS = 16   # multiple of 16 -> friendly for bf16 (16,128) native tiles
_MAX_TILE_ROWS = 128  # 16K spatial columns / tile: amortizes per-step overhead,
                      # keeps the f32 working set at a few MiB


def _fold8(x, rows):
    """(rows, 128) -> (8, 128) by summing aligned 8-row groups (pure VPU vreg adds)."""
    acc = x[0:8]
    for r in range(8, rows, 8):
        acc = acc + x[r:r + 8]
    return acc


def _dice_ce_kernel(pred_ref, lab_ref, acc_ref, *, num_classes, tile_rows):
    # pred_ref: (C, R, 128) logits tile (native dtype)
    # lab_ref : (R, 128) int32 class labels tile
    # acc_ref : (NQ*C*8, 128) f32 accumulator, resident across the spatial axis
    s_idx = pl.program_id(2)

    @pl.when(s_idx == 0)
    def _init():
        acc_ref[...] = jnp.zeros_like(acc_ref)

    C, R = num_classes, tile_rows
    labels = lab_ref[...]                                         # (R, 128) int32
    ch = [pred_ref[c].astype(jnp.float32) for c in range(C)]      # C x (R, 128) f32

    # softmax pieces over the (unrolled) channel loop -- element-wise VPU/EUP only
    m = ch[0]
    for c in range(1, C):
        m = jnp.maximum(m, ch[c])
    es = [jnp.exp(ch[c] - m) for c in range(C)]
    z = es[0]
    for c in range(1, C):
        z = z + es[c]

    inv_z = pl.reciprocal(z, approx=True)
    inv_z = inv_z * (2.0 - z * inv_z)      # one Newton-Raphson step -> full f32 accuracy
    logz = jnp.log(z)

    def acc_add(q, c, val):
        r0 = (q * C + c) * 8
        acc_ref[r0:r0 + 8, :] += _fold8(val, R)

    # cross-entropy per column: (m + logz) - logits[label]
    ce_cols = m + logz
    for c in range(C):
        onehot = (labels == c).astype(jnp.float32)
        p = es[c] * inv_z
        acc_add(_ROW_INTER, c, onehot * p)     # intersection
        acc_add(_ROW_GO, c, onehot)            # ground_o
        acc_add(_ROW_PO, c, p)                 # pred_o
        ce_cols = ce_cols - onehot * ch[c]
    acc_add(_ROW_CE, 0, ce_cols)


def _vmem_capacity_bytes():
    try:
        return int(pltpu.get_tpu_info().vmem_capacity_bytes)
    except Exception:
        return 64 << 20  # conservative (v7x)


def _round_up(x, m):
    return ((x + m - 1) // m) * m


def _choose_tile_rows(s_rows, C, pred_itemsize, lab_itemsize, budget_bytes):
    """Largest 16-multiple row tile s.t. 2x inputs + f32 working set + accumulator fit."""
    in_per_row = _LANES * (C * pred_itemsize + lab_itemsize)   # one input buffer
    tmp_per_row = (2 * C + 8) * _LANES * 4                     # live f32 temporaries
    per_row = 2 * in_per_row + tmp_per_row
    acc_bytes = 2 * _NQ * C * 8 * _LANES * 4                   # resident output block
    rows = (budget_bytes - acc_bytes) // per_row
    rows = min(rows, _MAX_TILE_ROWS, _round_up(s_rows, _MIN_TILE_ROWS))
    rows = max(_MIN_TILE_ROWS, (rows // 16) * 16)
    return int(rows)


def dice_ce_loss(y_pred, y_true, *, tile_rows=None, num_splits=None):
    """y_pred: (N, C, spatial...) float logits; y_true: (N, 1, spatial...) integer labels."""
    N, C = int(y_pred.shape[0]), int(y_pred.shape[1])
    S = int(np.prod(y_pred.shape[2:]))

    pred = y_pred.reshape(N, C, S)                    # stream at native width
    lab = y_true.reshape(N, 1, S).astype(jnp.int32)   # always int32 (no int64 DMA)

    s_rows = -(-S // _LANES)

    vmem_cap = _vmem_capacity_bytes()
    vmem_limit = int(min(48 << 20, max(32 << 20, vmem_cap // 2)))
    budget = (vmem_limit * 3) // 4

    if tile_rows is None:
        tile_rows = _choose_tile_rows(s_rows, C,
                                      jnp.dtype(pred.dtype).itemsize,
                                      jnp.dtype(lab.dtype).itemsize,
                                      budget)
    else:
        tile_rows = max(8, (int(tile_rows) // 8) * 8)

    if num_splits is None:
        num_splits = 2 if N == 1 else 1   # feed v7x's second TensorCore when N is tiny
    num_splits = max(1, int(num_splits))
    if num_splits > 1 and (_round_up(s_rows, tile_rows) // tile_rows) < num_splits:
        num_splits = 1

    rows_pad = _round_up(s_rows, tile_rows * num_splits)
    S_pad = rows_pad * _LANES
    if S_pad != S:
        pred = jnp.pad(pred, ((0, 0), (0, 0), (0, S_pad - S)))
        lab = jnp.pad(lab, ((0, 0), (0, 0), (0, S_pad - S)))
    pred = pred.reshape(N, C, rows_pad, _LANES)
    lab = lab.reshape(N, 1, rows_pad, _LANES)

    total_tiles = rows_pad // tile_rows
    tiles_per_split = total_tiles // num_splits

    kernel = functools.partial(_dice_ce_kernel, num_classes=C, tile_rows=tile_rows)
    acc_rows = _NQ * C * 8

    def pred_map(sp, b, s):
        return (b, 0, sp * tiles_per_split + s, 0)

    def lab_map(sp, b, s):
        return (b, 0, sp * tiles_per_split + s, 0)

    def out_map(sp, b, s):
        return (sp, b, 0, 0)

    grid_spec = pltpu.PrefetchScalarGridSpec(
        num_scalar_prefetch=0,
        grid=(num_splits, N, tiles_per_split),
        in_specs=[
            pl.BlockSpec((None, C, tile_rows, _LANES), pred_map),
            pl.BlockSpec((None, None, tile_rows, _LANES), lab_map),
        ],
        out_specs=pl.BlockSpec((None, None, acc_rows, _LANES), out_map),
    )

    acc = pl.pallas_call(
        kernel,
        out_shape=jax.ShapeDtypeStruct((num_splits, N, acc_rows, _LANES), jnp.float32),
        grid_spec=grid_spec,
        compiler_params=pltpu.CompilerParams(
            # split & batch axes independent (2-TC sharding on v7x); spatial axis is a reduction
            dimension_semantics=("parallel", "parallel", "arbitrary"),
            vmem_limit_bytes=vmem_limit,
        ),
    )(pred, lab)

    # Tiny (N, C) combine in plain JAX (MONAI DiceLoss mean + CE mean over N*S).
    tables = acc.reshape(num_splits, N, _NQ, C, 8, _LANES).sum(axis=(0, 4, 5))  # (N, NQ, C)

    inter = tables[:, _ROW_INTER]     # (N, C)
    ground_o = tables[:, _ROW_GO]
    pred_o = tables[:, _ROW_PO]
    ce_sum = jnp.sum(tables[:, _ROW_CE])

    # Analytic removal of zero-logit / label-0 padded columns (kept out of the hot loop):
    # each padded column adds go[0]+=1, inter[0]+=1/C, po[c]+=1/C (all c), ce+=log(C).
    n_pad = float(S_pad - S)
    if S_pad != S:
        inter = inter.at[:, 0].add(-n_pad / C)
        ground_o = ground_o.at[:, 0].add(-n_pad)
        pred_o = pred_o - n_pad / C
        ce_sum = ce_sum - N * n_pad * jnp.log(jnp.asarray(C, jnp.float32))

    f = 1.0 - (2.0 * inter + SMOOTH_NR) / (ground_o + pred_o + SMOOTH_DR)
    dice = jnp.mean(f)
    ce = ce_sum / (N * S)
    return dice + ce


def dice_ce_loss_ref(y_pred, y_true):
    """Pure-JAX reference for correctness check."""
    N, C = y_pred.shape[0], y_pred.shape[1]
    S = int(np.prod(y_pred.shape[2:]))
    pred = y_pred.reshape(N, C, S).astype(jnp.float32)
    lab = y_true.reshape(N, S).astype(jnp.int32)
    p = jax.nn.softmax(pred, axis=1)
    logp = jax.nn.log_softmax(pred, axis=1)
    onehot = jax.nn.one_hot(lab, C, axis=1, dtype=jnp.float32)   # (N, C, S)
    inter = jnp.sum(onehot * p, axis=2)
    go = jnp.sum(onehot, axis=2)
    po = jnp.sum(p, axis=2)
    f = 1.0 - (2.0 * inter + SMOOTH_NR) / (go + po + SMOOTH_DR)
    dice = jnp.mean(f)
    ce = -jnp.mean(jnp.take_along_axis(logp, lab[:, None, :], axis=1))
    return dice + ce


if __name__ == "__main__":
    key = jax.random.PRNGKey(0)
    ks = jax.random.split(key, 8)
    C = 4

    # 1) basic 2-D case, f32 logits (single tile + analytic pad-correction path)
    N, H, W = 2, 16, 16
    y_pred = jax.random.normal(ks[0], (N, C, H, W), dtype=jnp.float32)
    y_true = jax.random.randint(ks[1], (N, 1, H, W), 0, C, dtype=jnp.int32)
    out = jax.block_until_ready(dice_ce_loss(y_pred, y_true))
    ref = jax.block_until_ready(dice_ce_loss_ref(y_pred, y_true))
    np.testing.assert_allclose(np.asarray(out), np.asarray(ref), rtol=1e-5, atol=1e-5)

    # 2) multi-tile accumulation + padding (forced small tile)
    H2, W2 = 48, 48   # S = 2304 -> 18 rows of 128 -> 2 tiles of 16 rows (padded to 32)
    y_pred2 = jax.random.normal(ks[2], (N, C, H2, W2), dtype=jnp.float32)
    y_true2 = jax.random.randint(ks[3], (N, 1, H2, W2), 0, C, dtype=jnp.int32)
    out2 = jax.block_until_ready(dice_ce_loss(y_pred2, y_true2, tile_rows=16))
    ref2 = jax.block_until_ready(dice_ce_loss_ref(y_pred2, y_true2))
    np.testing.assert_allclose(np.asarray(out2), np.asarray(ref2), rtol=1e-5, atol=1e-5)

    # 3) batch of 1 (3-D volume): spatial reduction split over the extra parallel axis
    D3, H3, W3 = 8, 16, 16   # S = 2048 = 16 rows, tile_rows=8 -> 2 tiles -> num_splits=2
    y_pred3 = jax.random.normal(ks[4], (1, C, D3, H3, W3), dtype=jnp.float32)
    y_true3 = jax.random.randint(ks[5], (1, 1, D3, H3, W3), 0, C, dtype=jnp.int32)
    out3 = jax.block_until_ready(dice_ce_loss(y_pred3, y_true3, tile_rows=8))
    ref3 = jax.block_until_ready(dice_ce_loss_ref(y_pred3, y_true3))
    np.testing.assert_allclose(np.asarray(out3), np.asarray(ref3), rtol=1e-5, atol=1e-5)

    # 4) bf16 logits streamed at native width (cast to f32 inside the kernel)
    y_pred4 = y_pred2.astype(jnp.bfloat16)
    out4 = jax.block_until_ready(dice_ce_loss(y_pred4, y_true2))
    ref4 = jax.block_until_ready(dice_ce_loss_ref(y_pred4, y_true2))
    np.testing.assert_allclose(np.asarray(out4), np.asarray(ref4), rtol=2e-5, atol=2e-5)

    print("KERNEL_OK")
</pallas_src>

<mosaic_0001>
module attributes {stable_mosaic.version = 11 : i64} {
  func.func @_dice_ce_kernel(%arg0: i32, %arg1: i32, %arg2: i32, %arg3: memref<1x4x16x128xf32, #tpu.memory_space<vmem>>, %arg4: memref<1x1x16x128xi32, #tpu.memory_space<vmem>>, %arg5: memref<1x1x128x128xf32, #tpu.memory_space<vmem>>) attributes {dimension_semantics = [#tpu.dimension_semantics<parallel>, #tpu.dimension_semantics<parallel>, #tpu.dimension_semantics<arbitrary>], iteration_bounds = array<i64: 1, 2, 1>, scalar_prefetch = 0 : i64, scratch_operands = 0 : i64, tpu.core_type = #tpu.core_type<tc>, window_params = [{transform_indices = @transform_0, window_bounds = array<i64: 1, 4, 16, 128>}, {transform_indices = @transform_1, window_bounds = array<i64: 1, 1, 16, 128>}, {transform_indices = @transform_2, window_bounds = array<i64: 1, 1, 128, 128>}]} {
    %c0_i32 = arith.constant 0 : i32
    %0 = arith.cmpi eq, %arg2, %c0_i32 : i32
    %1 = arith.extui %0 : i1 to i32
    %c0_i32_0 = arith.constant 0 : i32
    %2 = arith.cmpi ne, %1, %c0_i32_0 : i32
    scf.if %2 {
      %cst_110 = arith.constant 0.000000e+00 : f32
      %183 = vector.broadcast %cst_110 : f32 to vector<128x128xf32>
      %c0_111 = arith.constant 0 : index
      %c0_112 = arith.constant 0 : index
      %c0_113 = arith.constant 0 : index
      %c0_114 = arith.constant 0 : index
      %184 = vector.load %arg5[%c0_111, %c0_112, %c0_113, %c0_114] : memref<1x1x128x128xf32, #tpu.memory_space<vmem>>, vector<1x1x128x128xf32>
      %185 = vector.shape_cast %184 : vector<1x1x128x128xf32> to vector<128x128xf32>
      %186 = vector.shape_cast %183 : vector<128x128xf32> to vector<1x1x128x128xf32>
      tpu.vector_store %arg5[%c0_111, %c0_112, %c0_113, %c0_114], %186 {strides = array<i32>} : memref<1x1x128x128xf32, #tpu.memory_space<vmem>>, vector<1x1x128x128xf32>,
    } else {
    }
    %c0 = arith.constant 0 : index
    %c0_1 = arith.constant 0 : index
    %c0_2 = arith.constant 0 : index
    %c0_3 = arith.constant 0 : index
    %3 = vector.load %arg4[%c0, %c0_1, %c0_2, %c0_3] : memref<1x1x16x128xi32, #tpu.memory_space<vmem>>, vector<1x1x16x128xi32>
    %4 = vector.shape_cast %3 : vector<1x1x16x128xi32> to vector<16x128xi32>
    %c0_4 = arith.constant 0 : index
    %c0_5 = arith.constant 0 : index
    %c0_6 = arith.constant 0 : index
    %c0_7 = arith.constant 0 : index
    %5 = vector.load %arg3[%c0_4, %c0_5, %c0_6, %c0_7] : memref<1x4x16x128xf32, #tpu.memory_space<vmem>>, vector<1x1x16x128xf32>
    %6 = vector.shape_cast %5 : vector<1x1x16x128xf32> to vector<16x128xf32>
    %c0_8 = arith.constant 0 : index
    %c1 = arith.constant 1 : index
    %c0_9 = arith.constant 0 : index
    %c0_10 = arith.constant 0 : index
    %7 = vector.load %arg3[%c0_8, %c1, %c0_9, %c0_10] : memref<1x4x16x128xf32, #tpu.memory_space<vmem>>, vector<1x1x16x128xf32>
    %8 = vector.shape_cast %7 : vector<1x1x16x128xf32> to vector<16x128xf32>
    %c0_11 = arith.constant 0 : index
    %c2 = arith.constant 2 : index
    %c0_12 = arith.constant 0 : index
    %c0_13 = arith.constant 0 : index
    %9 = vector.load %arg3[%c0_11, %c2, %c0_12, %c0_13] : memref<1x4x16x128xf32, #tpu.memory_space<vmem>>, vector<1x1x16x128xf32>
    %10 = vector.shape_cast %9 : vector<1x1x16x128xf32> to vector<16x128xf32>
    %c0_14 = arith.constant 0 : index
    %c3 = arith.constant 3 : index
    %c0_15 = arith.constant 0 : index
    %c0_16 = arith.constant 0 : index
    %11 = vector.load %arg3[%c0_14, %c3, %c0_15, %c0_16] : memref<1x4x16x128xf32, #tpu.memory_space<vmem>>, vector<1x1x16x128xf32>
    %12 = vector.shape_cast %11 : vector<1x1x16x128xf32> to vector<16x128xf32>
    %13 = arith.maximumf %6, %8 : vector<16x128xf32>
    %14 = arith.maximumf %13, %10 : vector<16x128xf32>
    %15 = arith.maximumf %14, %12 : vector<16x128xf32>
    %16 = arith.subf %6, %15 : vector<16x128xf32>
    %17 = math.exp %16 : vector<16x128xf32>
    %18 = arith.subf %8, %15 : vector<16x128xf32>
    %19 = math.exp %18 : vector<16x128xf32>
    %20 = arith.subf %10, %15 : vector<16x128xf32>
    %21 = math.exp %20 : vector<16x128xf32>
    %22 = arith.subf %12, %15 : vector<16x128xf32>
    %23 = math.exp %22 : vector<16x128xf32>
    %24 = arith.addf %17, %19 : vector<16x128xf32>
    %25 = arith.addf %24, %21 : vector<16x128xf32>
    %26 = arith.addf %25, %23 : vector<16x128xf32>
    %27 = tpu.reciprocal %26 {approx = true} : vector<16x128xf32> -> vector<16x128xf32>
    %28 = arith.mulf %26, %27 : vector<16x128xf32>
    %cst = arith.constant 2.000000e+00 : f32
    %29 = vector.broadcast %cst : f32 to vector<16x128xf32>
    %30 = arith.subf %29, %28 : vector<16x128xf32>
    %31 = arith.mulf %27, %30 : vector<16x128xf32>
    %32 = math.log %26 : vector<16x128xf32>
    %33 = arith.addf %15, %32 : vector<16x128xf32>
    %c0_i32_17 = arith.constant 0 : i32
    %34 = vector.broadcast %c0_i32_17 : i32 to vector<16x128xi32>
    %35 = arith.cmpi eq, %4, %34 : vector<16x128xi32>
    %36 = arith.extui %35 : vector<16x128xi1> to vector<16x128xi32>
    %37 = arith.sitofp %36 : vector<16x128xi32> to vector<16x128xf32>
    %38 = arith.mulf %17, %31 : vector<16x128xf32>
    %39 = arith.mulf %37, %38 : vector<16x128xf32>
    %c0_18 = arith.constant 0 : index
    %c0_19 = arith.constant 0 : index
    %c0_20 = arith.constant 0 : index
    %c0_21 = arith.constant 0 : index
    %40 = vector.load %arg5[%c0_18, %c0_19, %c0_20, %c0_21] : memref<1x1x128x128xf32, #tpu.memory_space<vmem>>, vector<1x1x8x128xf32>
    %41 = vector.shape_cast %40 : vector<1x1x8x128xf32> to vector<8x128xf32>
    %42 = vector.extract_strided_slice %39 {offsets = [0, 0], sizes = [8, 128], strides = [1, 1]} : vector<16x128xf32> to vector<8x128xf32>
    %43 = vector.extract_strided_slice %39 {offsets = [8, 0], sizes = [8, 128], strides = [1, 1]} : vector<16x128xf32> to vector<8x128xf32>
    %44 = arith.addf %42, %43 : vector<8x128xf32>
    %45 = arith.addf %41, %44 : vector<8x128xf32>
    %c0_22 = arith.constant 0 : index
    %c0_23 = arith.constant 0 : index
    %c0_24 = arith.constant 0 : index
    %c0_25 = arith.constant 0 : index
    %46 = vector.load %arg5[%c0_22, %c0_23, %c0_24, %c0_25] : memref<1x1x128x128xf32, #tpu.memory_space<vmem>>, vector<1x1x8x128xf32>
    %47 = vector.shape_cast %46 : vector<1x1x8x128xf32> to vector<8x128xf32>
    %48 = vector.shape_cast %45 : vector<8x128xf32> to vector<1x1x8x128xf32>
    tpu.vector_store %arg5[%c0_22, %c0_23, %c0_24, %c0_25], %48 {strides = array<i32>} : memref<1x1x128x128xf32, #tpu.memory_space<vmem>>, vector<1x1x8x128xf32>,
    %c0_26 = arith.constant 0 : index
    %c0_27 = arith.constant 0 : index
    %c32 = arith.constant 32 : index
    %c0_28 = arith.constant 0 : index
    %49 = vector.load %arg5[%c0_26, %c0_27, %c32, %c0_28] : memref<1x1x128x128xf32, #tpu.memory_space<vmem>>, vector<1x1x8x128xf32>
    %50 = vector.shape_cast %49 : vector<1x1x8x128xf32> to vector<8x128xf32>
    %51 = vector.extract_strided_slice %37 {offsets = [0, 0], sizes = [8, 128], strides = [1, 1]} : vector<16x128xf32> to vector<8x128xf32>
    %52 = vector.extract_strided_slice %37 {offsets = [8, 0], sizes = [8, 128], strides = [1, 1]} : vector<16x128xf32> to vector<8x128xf32>
    %53 = arith.addf %51, %52 : vector<8x128xf32>
    %54 = arith.addf %50, %53 : vector<8x128xf32>
    %c0_29 = arith.constant 0 : index
    %c0_30 = arith.constant 0 : index
    %c32_31 = arith.constant 32 : index
    %c0_32 = arith.constant 0 : index
    %55 = vector.load %arg5[%c0_29, %c0_30, %c32_31, %c0_32] : memref<1x1x128x128xf32, #tpu.memory_space<vmem>>, vector<1x1x8x128xf32>
    %56 = vector.shape_cast %55 : vector<1x1x8x128xf32> to vector<8x128xf32>
    %57 = vector.shape_cast %54 : vector<8x128xf32> to vector<1x1x8x128xf32>
    tpu.vector_store %arg5[%c0_29, %c0_30, %c32_31, %c0_32], %57 {strides = array<i32>} : memref<1x1x128x128xf32, #tpu.memory_space<vmem>>, vector<1x1x8x128xf32>,
    %c0_33 = arith.constant 0 : index
    %c0_34 = arith.constant 0 : index
    %c64 = arith.constant 64 : index
    %c0_35 = arith.constant 0 : index
    %58 = vector.load %arg5[%c0_33, %c0_34, %c64, %c0_35] : memref<1x1x128x128xf32, #tpu.memory_space<vmem>>, vector<1x1x8x128xf32>
    %59 = vector.shape_cast %58 : vector<1x1x8x128xf32> to vector<8x128xf32>
    %60 = vector.extract_strided_slice %38 {offsets = [0, 0], sizes = [8, 128], strides = [1, 1]} : vector<16x128xf32> to vector<8x128xf32>
    %61 = vector.extract_strided_slice %38 {offsets = [8, 0], sizes = [8, 128], strides = [1, 1]} : vector<16x128xf32> to vector<8x128xf32>
    %62 = arith.addf %60, %61 : vector<8x128xf32>
    %63 = arith.addf %59, %62 : vector<8x128xf32>
    %c0_36 = arith.constant 0 : index
    %c0_37 = arith.constant 0 : index
    %c64_38 = arith.constant 64 : index
    %c0_39 = arith.constant 0 : index
    %64 = vector.load %arg5[%c0_36, %c0_37, %c64_38, %c0_39] : memref<1x1x128x128xf32, #tpu.memory_space<vmem>>, vector<1x1x8x128xf32>
    %65 = vector.shape_cast %64 : vector<1x1x8x128xf32> to vector<8x128xf32>
    %66 = vector.shape_cast %63 : vector<8x128xf32> to vector<1x1x8x128xf32>
    tpu.vector_store %arg5[%c0_36, %c0_37, %c64_38, %c0_39], %66 {strides = array<i32>} : memref<1x1x128x128xf32, #tpu.memory_space<vmem>>, vector<1x1x8x128xf32>,
    %67 = arith.mulf %37, %6 : vector<16x128xf32>
    %68 = arith.subf %33, %67 : vector<16x128xf32>
    %c1_i32 = arith.constant 1 : i32
    %69 = vector.broadcast %c1_i32 : i32 to vector<16x128xi32>
    %70 = arith.cmpi eq, %4, %69 : vector<16x128xi32>
    %71 = arith.extui %70 : vector<16x128xi1> to vector<16x128xi32>
    %72 = arith.sitofp %71 : vector<16x128xi32> to vector<16x128xf32>
    %73 = arith.mulf %19, %31 : vector<16x128xf32>
    %74 = arith.mulf %72, %73 : vector<16x128xf32>
    %c0_40 = arith.constant 0 : index
    %c0_41 = arith.constant 0 : index
    %c8 = arith.constant 8 : index
    %c0_42 = arith.constant 0 : index
    %75 = vector.load %arg5[%c0_40, %c0_41, %c8, %c0_42] : memref<1x1x128x128xf32, #tpu.memory_space<vmem>>, vector<1x1x8x128xf32>
    %76 = vector.shape_cast %75 : vector<1x1x8x128xf32> to vector<8x128xf32>
    %77 = vector.extract_strided_slice %74 {offsets = [0, 0], sizes = [8, 128], strides = [1, 1]} : vector<16x128xf32> to vector<8x128xf32>
    %78 = vector.extract_strided_slice %74 {offsets = [8, 0], sizes = [8, 128], strides = [1, 1]} : vector<16x128xf32> to vector<8x128xf32>
    %79 = arith.addf %77, %78 : vector<8x128xf32>
    %80 = arith.addf %76, %79 : vector<8x128xf32>
    %c0_43 = arith.constant 0 : index
    %c0_44 = arith.constant 0 : index
    %c8_45 = arith.constant 8 : index
    %c0_46 = arith.constant 0 : index
    %81 = vector.load %arg5[%c0_43, %c0_44, %c8_45, %c0_46] : memref<1x1x128x128xf32, #tpu.memory_space<vmem>>, vector<1x1x8x128xf32>
    %82 = vector.shape_cast %81 : vector<1x1x8x128xf32> to vector<8x128xf32>
    %83 = vector.shape_cast %80 : vector<8x128xf32> to vector<1x1x8x128xf32>
    tpu.vector_store %arg5[%c0_43, %c0_44, %c8_45, %c0_46], %83 {strides = array<i32>} : memref<1x1x128x128xf32, #tpu.memory_space<vmem>>, vector<1x1x8x128xf32>,
    %c0_47 = arith.constant 0 : index
    %c0_48 = arith.constant 0 : index
    %c40 = arith.constant 40 : index
    %c0_49 = arith.constant 0 : index
    %84 = vector.load %arg5[%c0_47, %c0_48, %c40, %c0_49] : memref<1x1x128x128xf32, #tpu.memory_space<vmem>>, vector<1x1x8x128xf32>
    %85 = vector.shape_cast %84 : vector<1x1x8x128xf32> to vector<8x128xf32>
    %86 = vector.extract_strided_slice %72 {offsets = [0, 0], sizes = [8, 128], strides = [1, 1]} : vector<16x128xf32> to vector<8x128xf32>
    %87 = vector.extract_strided_slice %72 {offsets = [8, 0], sizes = [8, 128], strides = [1, 1]} : vector<16x128xf32> to vector<8x128xf32>
    %88 = arith.addf %86, %87 : vector<8x128xf32>
    %89 = arith.addf %85, %88 : vector<8x128xf32>
    %c0_50 = arith.constant 0 : index
    %c0_51 = arith.constant 0 : index
    %c40_52 = arith.constant 40 : index
    %c0_53 = arith.constant 0 : index
    %90 = vector.load %arg5[%c0_50, %c0_51, %c40_52, %c0_53] : memref<1x1x128x128xf32, #tpu.memory_space<vmem>>, vector<1x1x8x128xf32>
    %91 = vector.shape_cast %90 : vector<1x1x8x128xf32> to vector<8x128xf32>
    %92 = vector.shape_cast %89 : vector<8x128xf32> to vector<1x1x8x128xf32>
    tpu.vector_store %arg5[%c0_50, %c0_51, %c40_52, %c0_53], %92 {strides = array<i32>} : memref<1x1x128x128xf32, #tpu.memory_space<vmem>>, vector<1x1x8x128xf32>,
    %c0_54 = arith.constant 0 : index
    %c0_55 = arith.constant 0 : index
    %c72 = arith.constant 72 : index
    %c0_56 = arith.constant 0 : index
    %93 = vector.load %arg5[%c0_54, %c0_55, %c72, %c0_56] : memref<1x1x128x128xf32, #tpu.memory_space<vmem>>, vector<1x1x8x128xf32>
    %94 = vector.shape_cast %93 : vector<1x1x8x128xf32> to vector<8x128xf32>
    %95 = vector.extract_strided_slice %73 {offsets = [0, 0], sizes = [8, 128], strides = [1, 1]} : vector<16x128xf32> to vector<8x128xf32>
    %96 = vector.extract_strided_slice %73 {offsets = [8, 0], sizes = [8, 128], strides = [1, 1]} : vector<16x128xf32> to vector<8x128xf32>
    %97 = arith.addf %95, %96 : vector<8x128xf32>
    %98 = arith.addf %94, %97 : vector<8x128xf32>
    %c0_57 = arith.constant 0 : index
    %c0_58 = arith.constant 0 : index
    %c72_59 = arith.constant 72 : index
    %c0_60 = arith.constant 0 : index
    %99 = vector.load %arg5[%c0_57, %c0_58, %c72_59, %c0_60] : memref<1x1x128x128xf32, #tpu.memory_space<vmem>>, vector<1x1x8x128xf32>
    %100 = vector.shape_cast %99 : vector<1x1x8x128xf32> to vector<8x128xf32>
    %101 = vector.shape_cast %98 : vector<8x128xf32> to vector<1x1x8x128xf32>
    tpu.vector_store %arg5[%c0_57, %c0_58, %c72_59, %c0_60], %101 {strides = array<i32>} : memref<1x1x128x128xf32, #tpu.memory_space<vmem>>, vector<1x1x8x128xf32>,
    %102 = arith.mulf %72, %8 : vector<16x128xf32>
    %103 = arith.subf %68, %102 : vector<16x128xf32>
    %c2_i32 = arith.constant 2 : i32
    %104 = vector.broadcast %c2_i32 : i32 to vector<16x128xi32>
    %105 = arith.cmpi eq, %4, %104 : vector<16x128xi32>
    %106 = arith.extui %105 : vector<16x128xi1> to vector<16x128xi32>
    %107 = arith.sitofp %106 : vector<16x128xi32> to vector<16x128xf32>
    %108 = arith.mulf %21, %31 : vector<16x128xf32>
    %109 = arith.mulf %107, %108 : vector<16x128xf32>
    %c0_61 = arith.constant 0 : index
    %c0_62 = arith.constant 0 : index
    %c16 = arith.constant 16 : index
    %c0_63 = arith.constant 0 : index
    %110 = vector.load %arg5[%c0_61, %c0_62, %c16, %c0_63] : memref<1x1x128x128xf32, #tpu.memory_space<vmem>>, vector<1x1x8x128xf32>
    %111 = vector.shape_cast %110 : vector<1x1x8x128xf32> to vector<8x128xf32>
    %112 = vector.extract_strided_slice %109 {offsets = [0, 0], sizes = [8, 128], strides = [1, 1]} : vector<16x128xf32> to vector<8x128xf32>
    %113 = vector.extract_strided_slice %109 {offsets = [8, 0], sizes = [8, 128], strides = [1, 1]} : vector<16x128xf32> to vector<8x128xf32>
    %114 = arith.addf %112, %113 : vector<8x128xf32>
    %115 = arith.addf %111, %114 : vector<8x128xf32>
    %c0_64 = arith.constant 0 : index
    %c0_65 = arith.constant 0 : index
    %c16_66 = arith.constant 16 : index
    %c0_67 = arith.constant 0 : index
    %116 = vector.load %arg5[%c0_64, %c0_65, %c16_66, %c0_67] : memref<1x1x128x128xf32, #tpu.memory_space<vmem>>, vector<1x1x8x128xf32>
    %117 = vector.shape_cast %116 : vector<1x1x8x128xf32> to vector<8x128xf32>
    %118 = vector.shape_cast %115 : vector<8x128xf32> to vector<1x1x8x128xf32>
    tpu.vector_store %arg5[%c0_64, %c0_65, %c16_66, %c0_67], %118 {strides = array<i32>} : memref<1x1x128x128xf32, #tpu.memory_space<vmem>>, vector<1x1x8x128xf32>,
    %c0_68 = arith.constant 0 : index
    %c0_69 = arith.constant 0 : index
    %c48 = arith.constant 48 : index
    %c0_70 = arith.constant 0 : index
    %119 = vector.load %arg5[%c0_68, %c0_69, %c48, %c0_70] : memref<1x1x128x128xf32, #tpu.memory_space<vmem>>, vector<1x1x8x128xf32>
    %120 = vector.shape_cast %119 : vector<1x1x8x128xf32> to vector<8x128xf32>
    %121 = vector.extract_strided_slice %107 {offsets = [0, 0], sizes = [8, 128], strides = [1, 1]} : vector<16x128xf32> to vector<8x128xf32>
    %122 = vector.extract_strided_slice %107 {offsets = [8, 0], sizes = [8, 128], strides = [1, 1]} : vector<16x128xf32> to vector<8x128xf32>
    %123 = arith.addf %121, %122 : vector<8x128xf32>
    %124 = arith.addf %120, %123 : vector<8x128xf32>
    %c0_71 = arith.constant 0 : index
    %c0_72 = arith.constant 0 : index
    %c48_73 = arith.constant 48 : index
    %c0_74 = arith.constant 0 : index
    %125 = vector.load %arg5[%c0_71, %c0_72, %c48_73, %c0_74] : memref<1x1x128x128xf32, #tpu.memory_space<vmem>>, vector<1x1x8x128xf32>
    %126 = vector.shape_cast %125 : vector<1x1x8x128xf32> to vector<8x128xf32>
    %127 = vector.shape_cast %124 : vector<8x128xf32> to vector<1x1x8x128xf32>
    tpu.vector_store %arg5[%c0_71, %c0_72, %c48_73, %c0_74], %127 {strides = array<i32>} : memref<1x1x128x128xf32, #tpu.memory_space<vmem>>, vector<1x1x8x128xf32>,
    %c0_75 = arith.constant 0 : index
    %c0_76 = arith.constant 0 : index
    %c80 = arith.constant 80 : index
    %c0_77 = arith.constant 0 : index
    %128 = vector.load %arg5[%c0_75, %c0_76, %c80, %c0_77] : memref<1x1x128x128xf32, #tpu.memory_space<vmem>>, vector<1x1x8x128xf32>
    %129 = vector.shape_cast %128 : vector<1x1x8x128xf32> to vector<8x128xf32>
    %130 = vector.extract_strided_slice %108 {offsets = [0, 0], sizes = [8, 128], strides = [1, 1]} : vector<16x128xf32> to vector<8x128xf32>
    %131 = vector.extract_strided_slice %108 {offsets = [8, 0], sizes = [8, 128], strides = [1, 1]} : vector<16x128xf32> to vector<8x128xf32>
    %132 = arith.addf %130, %131 : vector<8x128xf32>
    %133 = arith.addf %129, %132 : vector<8x128xf32>
    %c0_78 = arith.constant 0 : index
    %c0_79 = arith.constant 0 : index
    %c80_80 = arith.constant 80 : index
    %c0_81 = arith.constant 0 : index
    %134 = vector.load %arg5[%c0_78, %c0_79, %c80_80, %c0_81] : memref<1x1x128x128xf32, #tpu.memory_space<vmem>>, vector<1x1x8x128xf32>
    %135 = vector.shape_cast %134 : vector<1x1x8x128xf32> to vector<8x128xf32>
    %136 = vector.shape_cast %133 : vector<8x128xf32> to vector<1x1x8x128xf32>
    tpu.vector_store %arg5[%c0_78, %c0_79, %c80_80, %c0_81], %136 {strides = array<i32>} : memref<1x1x128x128xf32, #tpu.memory_space<vmem>>, vector<1x1x8x128xf32>,
    %137 = arith.mulf %107, %10 : vector<16x128xf32>
    %138 = arith.subf %103, %137 : vector<16x128xf32>
    %c3_i32 = arith.constant 3 : i32
    %139 = vector.broadcast %c3_i32 : i32 to vector<16x128xi32>
    %140 = arith.cmpi eq, %4, %139 : vector<16x128xi32>
    %141 = arith.extui %140 : vector<16x128xi1> to vector<16x128xi32>
    %142 = arith.sitofp %141 : vector<16x128xi32> to vector<16x128xf32>
    %143 = arith.mulf %23, %31 : vector<16x128xf32>
    %144 = arith.mulf %142, %143 : vector<16x128xf32>
    %c0_82 = arith.constant 0 : index
    %c0_83 = arith.constant 0 : index
    %c24 = arith.constant 24 : index
    %c0_84 = arith.constant 0 : index
    %145 = vector.load %arg5[%c0_82, %c0_83, %c24, %c0_84] : memref<1x1x128x128xf32, #tpu.memory_space<vmem>>, vector<1x1x8x128xf32>
    %146 = vector.shape_cast %145 : vector<1x1x8x128xf32> to vector<8x128xf32>
    %147 = vector.extract_strided_slice %144 {offsets = [0, 0], sizes = [8, 128], strides = [1, 1]} : vector<16x128xf32> to vector<8x128xf32>
    %148 = vector.extract_strided_slice %144 {offsets = [8, 0], sizes = [8, 128], strides = [1, 1]} : vector<16x128xf32> to vector<8x128xf32>
    %149 = arith.addf %147, %148 : vector<8x128xf32>
    %150 = arith.addf %146, %149 : vector<8x128xf32>
    %c0_85 = arith.constant 0 : index
    %c0_86 = arith.constant 0 : index
    %c24_87 = arith.constant 24 : index
    %c0_88 = arith.constant 0 : index
    %151 = vector.load %arg5[%c0_85, %c0_86, %c24_87, %c0_88] : memref<1x1x128x128xf32, #tpu.memory_space<vmem>>, vector<1x1x8x128xf32>
    %152 = vector.shape_cast %151 : vector<1x1x8x128xf32> to vector<8x128xf32>
    %153 = vector.shape_cast %150 : vector<8x128xf32> to vector<1x1x8x128xf32>
    tpu.vector_store %arg5[%c0_85, %c0_86, %c24_87, %c0_88], %153 {strides = array<i32>} : memref<1x1x128x128xf32, #tpu.memory_space<vmem>>, vector<1x1x8x128xf32>,
    %c0_89 = arith.constant 0 : index
    %c0_90 = arith.constant 0 : index
    %c56 = arith.constant 56 : index
    %c0_91 = arith.constant 0 : index
    %154 = vector.load %arg5[%c0_89, %c0_90, %c56, %c0_91] : memref<1x1x128x128xf32, #tpu.memory_space<vmem>>, vector<1x1x8x128xf32>
    %155 = vector.shape_cast %154 : vector<1x1x8x128xf32> to vector<8x128xf32>
    %156 = vector.extract_strided_slice %142 {offsets = [0, 0], sizes = [8, 128], strides = [1, 1]} : vector<16x128xf32> to vector<8x128xf32>
    %157 = vector.extract_strided_slice %142 {offsets = [8, 0], sizes = [8, 128], strides = [1, 1]} : vector<16x128xf32> to vector<8x128xf32>
    %158 = arith.addf %156, %157 : vector<8x128xf32>
    %159 = arith.addf %155, %158 : vector<8x128xf32>
    %c0_92 = arith.constant 0 : index
    %c0_93 = arith.constant 0 : index
    %c56_94 = arith.constant 56 : index
    %c0_95 = arith.constant 0 : index
    %160 = vector.load %arg5[%c0_92, %c0_93, %c56_94, %c0_95] : memref<1x1x128x128xf32, #tpu.memory_space<vmem>>, vector<1x1x8x128xf32>
    %161 = vector.shape_cast %160 : vector<1x1x8x128xf32> to vector<8x128xf32>
    %162 = vector.shape_cast %159 : vector<8x128xf32> to vector<1x1x8x128xf32>
    tpu.vector_store %arg5[%c0_92, %c0_93, %c56_94, %c0_95], %162 {strides = array<i32>} : memref<1x1x128x128xf32, #tpu.memory_space<vmem>>, vector<1x1x8x128xf32>,
    %c0_96 = arith.constant 0 : index
    %c0_97 = arith.constant 0 : index
    %c88 = arith.constant 88 : index
    %c0_98 = arith.constant 0 : index
    %163 = vector.load %arg5[%c0_96, %c0_97, %c88, %c0_98] : memref<1x1x128x128xf32, #tpu.memory_space<vmem>>, vector<1x1x8x128xf32>
    %164 = vector.shape_cast %163 : vector<1x1x8x128xf32> to vector<8x128xf32>
    %165 = vector.extract_strided_slice %143 {offsets = [0, 0], sizes = [8, 128], strides = [1, 1]} : vector<16x128xf32> to vector<8x128xf32>
    %166 = vector.extract_strided_slice %143 {offsets = [8, 0], sizes = [8, 128], strides = [1, 1]} : vector<16x128xf32> to vector<8x128xf32>
    %167 = arith.addf %165, %166 : vector<8x128xf32>
    %168 = arith.addf %164, %167 : vector<8x128xf32>
    %c0_99 = arith.constant 0 : index
    %c0_100 = arith.constant 0 : index
    %c88_101 = arith.constant 88 : index
    %c0_102 = arith.constant 0 : index
    %169 = vector.load %arg5[%c0_99, %c0_100, %c88_101, %c0_102] : memref<1x1x128x128xf32, #tpu.memory_space<vmem>>, vector<1x1x8x128xf32>
    %170 = vector.shape_cast %169 : vector<1x1x8x128xf32> to vector<8x128xf32>
    %171 = vector.shape_cast %168 : vector<8x128xf32> to vector<1x1x8x128xf32>
    tpu.vector_store %arg5[%c0_99, %c0_100, %c88_101, %c0_102], %171 {strides = array<i32>} : memref<1x1x128x128xf32, #tpu.memory_space<vmem>>, vector<1x1x8x128xf32>,
    %172 = arith.mulf %142, %12 : vector<16x128xf32>
    %173 = arith.subf %138, %172 : vector<16x128xf32>
    %c0_103 = arith.constant 0 : index
    %c0_104 = arith.constant 0 : index
    %c96 = arith.constant 96 : index
    %c0_105 = arith.constant 0 : index
    %174 = vector.load %arg5[%c0_103, %c0_104, %c96, %c0_105] : memref<1x1x128x128xf32, #tpu.memory_space<vmem>>, vector<1x1x8x128xf32>
    %175 = vector.shape_cast %174 : vector<1x1x8x128xf32> to vector<8x128xf32>
    %176 = vector.extract_strided_slice %173 {offsets = [0, 0], sizes = [8, 128], strides = [1, 1]} : vector<16x128xf32> to vector<8x128xf32>
    %177 = vector.extract_strided_slice %173 {offsets = [8, 0], sizes = [8, 128], strides = [1, 1]} : vector<16x128xf32> to vector<8x128xf32>
    %178 = arith.addf %176, %177 : vector<8x128xf32>
    %179 = arith.addf %175, %178 : vector<8x128xf32>
    %c0_106 = arith.constant 0 : index
    %c0_107 = arith.constant 0 : index
    %c96_108 = arith.constant 96 : index
    %c0_109 = arith.constant 0 : index
    %180 = vector.load %arg5[%c0_106, %c0_107, %c96_108, %c0_109] : memref<1x1x128x128xf32, #tpu.memory_space<vmem>>, vector<1x1x8x128xf32>
    %181 = vector.shape_cast %180 : vector<1x1x8x128xf32> to vector<8x128xf32>
    %182 = vector.shape_cast %179 : vector<8x128xf32> to vector<1x1x8x128xf32>
    tpu.vector_store %arg5[%c0_106, %c0_107, %c96_108, %c0_109], %182 {strides = array<i32>} : memref<1x1x128x128xf32, #tpu.memory_space<vmem>>, vector<1x1x8x128xf32>,
    return
  }
  func.func @transform_0(%arg0: i32, %arg1: i32, %arg2: i32) -> (i32, i32, i32, i32) {
    %c1_i32 = arith.constant 1 : i32
    %0 = arith.muli %arg0, %c1_i32 : i32
    %1 = arith.addi %0, %arg2 : i32
    %c0_i32 = arith.constant 0 : i32
    %c0_i32_0 = arith.constant 0 : i32
    %c0_i32_1 = arith.constant 0 : i32
    return %arg1, %c0_i32, %1, %c0_i32_0 : i32, i32, i32, i32
  }
  func.func @transform_1(%arg0: i32, %arg1: i32, %arg2: i32) -> (i32, i32, i32, i32) {
    %c1_i32 = arith.constant 1 : i32
    %0 = arith.muli %arg0, %c1_i32 : i32
    %1 = arith.addi %0, %arg2 : i32
    %c0_i32 = arith.constant 0 : i32
    %c0_i32_0 = arith.constant 0 : i32
    %c0_i32_1 = arith.constant 0 : i32
    return %arg1, %c0_i32, %1, %c0_i32_0 : i32, i32, i32, i32
  }
  func.func @transform_2(%arg0: i32, %arg1: i32, %arg2: i32) -> (i32, i32, i32, i32) {
    %c0_i32 = arith.constant 0 : i32
    %c0_i32_0 = arith.constant 0 : i32
    %c0_i32_1 = arith.constant 0 : i32
    return %arg0, %arg1, %c0_i32, %c0_i32_0 : i32, i32, i32, i32
  }
}

</mosaic_0001>

<llo_original>
// kernel: tpu_custom_call.1
$region0: #{tpu_custom_call.1}
  #allocation0 [shape = 'u32[]', space=smem, size = 0x4, offset = 0x4, fixed_abs, tag = 'smem constant byte address 0x4 - core index']
  #allocation1 [shape = 'u32[144,128]{1,0:T(1,128)}', space=vmem, size = 0x12000, scoped, tag = 'internal scratch']
  %s0 = inlined_call_operand.hbm [shape: f32[2,4,16,128], index: 0, kind: input, shape index: {}]
  %s1 = inlined_call_operand.hbm [shape: s32[2,1,16,128], index: 1, kind: input, shape index: {}]
  %s2 = inlined_call_operand.hbm [shape: f32[1,2,128,128], index: 2, kind: output, shape index: {}]
  %s3 = sld [smem:[#allocation0]]
  $region53: #{tpu_custom_call.1} parent=0
    _
  %s5 = ssub.s32 1, %s3
  %s6 = scalar_select 0, %s5, %s3
  $region1: #{tpu_custom_call.1} parent=0
    #allocation2 [shape = 'u8[65536]{0}', space=vmem, size = 0x10000, scoped, tag = 'input window, operand 0']
    #allocation3 [shape = 's32[2]{0}', space=sflag, size = 0x8, scoped, tag = 'scoped memory for tpu_custom_call.1']
    #allocation4 [shape = 's32[2]{0}', space=sflag, size = 0x8, scoped, tag = 'scoped memory for tpu_custom_call.1']
    #allocation5 [shape = 'u8[16384]{0}', space=vmem, size = 0x4000, scoped, tag = 'input window, operand 1']
    #allocation6 [shape = 's32[2]{0}', space=sflag, size = 0x8, scoped, tag = 'scoped memory for tpu_custom_call.1']
    #allocation7 [shape = 'u8[131072]{0}', space=vmem, size = 0x20000, scoped, tag = 'output window, operand 0']
    %7 = vsyncpa [#allocation3], 0
    %s8 = scalar_lea.sflag [#allocation3], 1
    %9 = vsyncpa %s8, 0
    %10 = vsyncpa [#allocation6], 0
    %s11 = scalar_lea.sflag [#allocation6], 1
    %12 = vsyncpa %s11, 0
    %13 = vsyncpa [#allocation4], 0
    %s14 = scalar_lea.sflag [#allocation4], 1
    %15 = vsyncpa %s14, 0
    loop: start=0, step=1, limit=4
    $region2: #{tpu_custom_call.1} parent=1 // loop_pre_header
      _
    $region3: #{tpu_custom_call.1} parent=1 // loop_header
      %s17 = sphi 0, %s21
      %p18 = scmp.ge.s32.totalorder %s17, 4
      %s24 = sphi 0, %s43
      %s25 = sphi 0, %s39
      %s26 = sphi 0, %s35
      %s27 = sphi 0, %s24
      %s28 = sphi 0, %s25
      %s29 = sphi 0, %s26
      %s30 = sphi 0, %s27
      %s31 = sphi 0, %s28
      %s32 = sphi 0, %s29
      %s50 = sphi 0, %s52
      %s53 = sphi 0, %s50
      %s54 = sphi 0, %s53
      %s70 = sphi 0, %s54
      %s80 = sphi 0, %s82
      %s83 = sphi 0, %s80
      %s84 = sphi 0, %s83
      %s100 = sphi 0, %s84
      %s108 = sphi 0, %s110
      %s111 = sphi 0, %s108
      %s112 = sphi 0, %s111
      %s128 = sphi 0, %s112
    $region4: #{tpu_custom_call.1} parent=1 // loop_header_branch
      %20 = sbr.rel (%p18) target = $region8
    $region5: #{tpu_custom_call.1} parent=1 // loop_body
      %s22 = ssub.s32 %s17, 1
      %s23 = ssub.s32 %s17, 2
      %s33 = sadd.s32 1, %s26
      %p34 = scmp.ge.s32.totalorder %s33, 1
      %s35 = scalar_select %p34, 0, %s33
      %s36 = sadd.s32 1, %s25
      %s37 = scalar_select %p34, %s36, %s25
      %p38 = scmp.ge.s32.totalorder %s37, 2
      %s39 = scalar_select %p38, 0, %s37
      %s40 = sadd.s32 1, %s24
      %s41 = scalar_select %p38, %s40, %s24
      %p42 = scmp.ge.s32.totalorder %s41, 1
      %s43 = scalar_select %p42, 0, %s41
      %s44 = sadd.s32 %s24, %s26
      %s45 = sadd.s32 %s43, %s35
      %s46 = ssub.s32 %s25, %s39
      %s47 = ssub.s32 %s44, %s45
      %s48 = sor.u32 %s46, %s47
      %p49 = scmp.eq.s32.totalorder %s48, 0
      %s51 = sadd.s32 %s50, 1
      %s52 = scalar_select %p49, %s50, %s51
      %p55 = pneg %p49
      %p56 = scmp.eq.s32.totalorder %s17, 1
      %p57 = por %p55, %p56
      %p58 = scmp.ne.s32.totalorder %s50, %s53
      %p59 = scmp.eq.s32.totalorder %s17, 0
      %p60 = por %p58, %p59
      %p61 = scmp.ne.s32.totalorder %s50, %s53
      %p62 = scmp.eq.s32.totalorder %s22, 1
      %p63 = por %p61, %p62
      %p64 = scmp.ne.s32.totalorder %s53, %s54
      %p65 = scmp.eq.s32.totalorder %s22, 0
      %p66 = por %p64, %p65
      %p67 = scmp.ne.s32.totalorder %s53, %s54
      %p68 = scmp.eq.s32.totalorder %s23, 1
      %p69 = por %p67, %p68
      %p71 = scmp.ne.s32.totalorder %s54, %s70
      %p72 = scmp.eq.s32.totalorder %s23, 0
      %p73 = por %p71, %p72
      %s74 = sadd.s32 %s24, %s26
      %s75 = sadd.s32 %s43, %s35
      %s76 = ssub.s32 %s25, %s39
      %s77 = ssub.s32 %s74, %s75
      %s78 = sor.u32 %s76, %s77
      %p79 = scmp.eq.s32.totalorder %s78, 0
      %s81 = sadd.s32 %s80, 1
      %s82 = scalar_select %p79, %s80, %s81
      %p85 = pneg %p79
      %p86 = scmp.eq.s32.totalorder %s17, 1
      %p87 = por %p85, %p86
      %p88 = scmp.ne.s32.totalorder %s80, %s83
      %p89 = scmp.eq.s32.totalorder %s17, 0
      %p90 = por %p88, %p89
      %p91 = scmp.ne.s32.totalorder %s80, %s83
      %p92 = scmp.eq.s32.totalorder %s22, 1
      %p93 = por %p91, %p92
      %p94 = scmp.ne.s32.totalorder %s83, %s84
      %p95 = scmp.eq.s32.totalorder %s22, 0
      %p96 = por %p94, %p95
      %p97 = scmp.ne.s32.totalorder %s83, %s84
      %p98 = scmp.eq.s32.totalorder %s23, 1
      %p99 = por %p97, %p98
      %p101 = scmp.ne.s32.totalorder %s84, %s100
      %p102 = scmp.eq.s32.totalorder %s23, 0
      %p103 = por %p101, %p102
      %s104 = ssub.s32 %s24, %s43
      %s105 = ssub.s32 %s25, %s39
      %s106 = sor.u32 %s104, %s105
      %p107 = scmp.eq.s32.totalorder %s106, 0
      %s109 = sadd.s32 %s108, 1
      %s110 = scalar_select %p107, %s108, %s109
      %p113 = pneg %p107
      %p114 = scmp.eq.s32.totalorder %s17, 1
      %p115 = por %p113, %p114
      %p116 = scmp.ne.s32.totalorder %s108, %s111
      %p117 = scmp.eq.s32.totalorder %s17, 0
      %p118 = por %p116, %p117
      %p119 = scmp.ne.s32.totalorder %s108, %s111
      %p120 = scmp.eq.s32.totalorder %s22, 1
      %p121 = por %p119, %p120
      %p122 = scmp.ne.s32.totalorder %s111, %s112
      %p123 = scmp.eq.s32.totalorder %s22, 0
      %p124 = por %p122, %p123
      %p125 = scmp.ne.s32.totalorder %s111, %s112
      %p126 = scmp.eq.s32.totalorder %s23, 1
      %p127 = por %p125, %p126
      %p129 = scmp.ne.s32.totalorder %s112, %s128
      %p130 = scmp.eq.s32.totalorder %s23, 0
      %p131 = por %p129, %p130
      %p132 = scmp.le.s32.totalorder 1, %s17
      %p133 = scmp.lt.s32.totalorder %s17, 3
      %p134 = pnand %p132, %p133
      %p135 = pneg %p134
      // Predicated region
      $region9: #{tpu_custom_call.1} parent=5 // pred_check
        _
      $region10: #{tpu_custom_call.1} parent=5 // pred_check_branch
        %137 = sbr.rel (%p134) target = $region12
      $region11: #{tpu_custom_call.1} parent=5 // pred_region
        %s138 = ssub.s32 %s17, 1
      $region12: #{tpu_custom_call.1} parent=5 // pred_fallthru
        _
      %p139 = scmp.lt.s32.totalorder %s17, 2
      // Predicated region
      $region13: #{tpu_custom_call.1} parent=5 // pred_check
        %p140 = pneg %p139
      $region14: #{tpu_custom_call.1} parent=5 // pred_check_branch
        %142 = sbr.rel (%p140) target = $region16
      $region15: #{tpu_custom_call.1} parent=5 // pred_region
        // Predicated region
        $region17: #{tpu_custom_call.1} parent=15 // pred_check
          %p143 = pneg %p60
        $region18: #{tpu_custom_call.1} parent=15 // pred_check_branch
          %145 = sbr.rel (%p143) target = $region20
        $region19: #{tpu_custom_call.1} parent=15 // pred_region
          %s146 = sand.u32 %s50, 1
          %s147 = scalar_lea.sflag [#allocation3], %s146
          %s148 = sand.u32 %s50, 1
          %s149 = smul.addr %s148, 64
          %s150 = scalar_lea.vmem [#allocation2], %s149
          %s151 = sadd.s32 %s24, %s26
          %s152 = smul.u32 2, %s151
          %s154 = ssub.s32 1024, 1024
          %155 = vsyncadd %s147, %s154
          %s156 = smul.addr %s25, 8
          %s157 = sadd.s32 %s152, %s156
          %s158 = smul.addr %s157, 128
          %s159 = scalar_lea.hbm %s0, %s158
          %s160 = sshll.u32 %s150, 4
          %s161 = int_to_ptr.vmem [resolvable:$true] %s160
          %166 = dma.hbm_to_vmem [thread:$0]  %s159, 1024, %s161, %s147, 128, 128, 8
        $region20: #{tpu_custom_call.1} parent=15 // pred_fallthru
          _
        // Predicated region
        $region21: #{tpu_custom_call.1} parent=15 // pred_check
          %p167 = pneg %p90
        $region22: #{tpu_custom_call.1} parent=15 // pred_check_branch
          %169 = sbr.rel (%p167) target = $region24
        $region23: #{tpu_custom_call.1} parent=15 // pred_region
          %s170 = sand.u32 %s80, 1
          %s171 = scalar_lea.sflag [#allocation6], %s170
          %s172 = sand.u32 %s80, 1
          %s173 = smul.addr %s172, 16
          %s174 = scalar_lea.vmem [#allocation5], %s173
          %s175 = sadd.s32 %s24, %s26
          %s176 = smul.u32 2, %s175
          %s178 = ssub.s32 256, 256
          %179 = vsyncadd %s171, %s178
          %s180 = smul.addr %s25, 2
          %s181 = sadd.s32 %s176, %s180
          %s182 = smul.addr %s181, 128
          %s183 = scalar_lea.hbm %s1, %s182
          %s184 = sshll.u32 %s174, 4
          %s185 = int_to_ptr.vmem [resolvable:$true] %s184
          %190 = dma.hbm_to_vmem [thread:$0]  %s183, 256, %s185, %s171, 128, 128, 8
        $region24: #{tpu_custom_call.1} parent=15 // pred_fallthru
          _
      $region16: #{tpu_custom_call.1} parent=5 // pred_fallthru
        _
      %p191 = scmp.le.s32.totalorder 1, %s17
      %p192 = scmp.lt.s32.totalorder %s17, 3
      %p193 = pnand %p191, %p192
      %p194 = pneg %p193
      // Predicated region
      $region25: #{tpu_custom_call.1} parent=5 // pred_check
        _
      $region26: #{tpu_custom_call.1} parent=5 // pred_check_branch
        %196 = sbr.rel (%p193) target = $region28
      $region27: #{tpu_custom_call.1} parent=5 // pred_region
        %s197 = ssub.s32 %s17, 1
        %s198 = sand.u32 %s53, 1
        %s199 = scalar_lea.sflag [#allocation3], %s198
        %s200 = sand.u32 %s53, 1
        %s201 = smul.addr %s200, 64
        %s202 = scalar_lea.vmem [#allocation2], %s201
        // Predicated region
        $region29: #{tpu_custom_call.1} parent=27 // pred_check
          %p203 = pneg %p66
        $region30: #{tpu_custom_call.1} parent=27 // pred_check_branch
          %205 = sbr.rel (%p203) target = $region32
        $region31: #{tpu_custom_call.1} parent=27 // pred_region
          %206 = dma.done %s199, 1024
        $region32: #{tpu_custom_call.1} parent=27 // pred_fallthru
          _
        %s207 = sand.u32 %s83, 1
        %s208 = scalar_lea.sflag [#allocation6], %s207
        %s209 = sand.u32 %s83, 1
        %s210 = smul.addr %s209, 16
        %s211 = scalar_lea.vmem [#allocation5], %s210
        // Predicated region
        $region33: #{tpu_custom_call.1} parent=27 // pred_check
          %p212 = pneg %p96
        $region34: #{tpu_custom_call.1} parent=27 // pred_check_branch
          %214 = sbr.rel (%p212) target = $region36
        $region35: #{tpu_custom_call.1} parent=27 // pred_region
          %215 = dma.done %s208, 256
        $region36: #{tpu_custom_call.1} parent=27 // pred_fallthru
          _
        %s216 = sand.u32 %s53, 1
        %s217 = scalar_lea.sflag [#allocation3], %s216
        %s218 = sand.u32 %s53, 1
        %s219 = smul.addr %s218, 64
        %s220 = scalar_lea.vmem [#allocation2], %s219
        %p221 = pneg %p66
        %p222 = pneg %p63
        %s223 = sand.u32 %s83, 1
        %s224 = scalar_lea.sflag [#allocation6], %s223
        %s225 = sand.u32 %s83, 1
        %s226 = smul.addr %s225, 16
        %s227 = scalar_lea.vmem [#allocation5], %s226
        %p228 = pneg %p96
        %p229 = pneg %p93
        %p230 = pneg %p124
        %p231 = pneg %p121
        %s232 = sand.u32 %s111, 1
        %s233 = scalar_lea.sflag [#allocation4], %s232
        %s234 = sand.u32 %s111, 1
        %s235 = smul.addr %s234, 128
        %s236 = scalar_lea.vmem [#allocation7], %s235
        %s237 = sadd.s32 %s27, %s29
        %s238 = smul.u32 2, %s237
        %s239 = sadd.s32 %s27, %s29
        %s240 = smul.u32 2, %s239
        %p241 = scmp.eq.s32.totalorder %s29, 0
        // Predicated region
        $region37: #{tpu_custom_call.1} parent=27 // pred_check
          %p242 = pneg %p241
        $region38: #{tpu_custom_call.1} parent=27 // pred_check_branch
          %244 = sbr.rel (%p242) target = $region40
        $region39: #{tpu_custom_call.1} parent=27 // pred_region
          %245 = vst [vmem:[%s236] sm:$0xff] 0.0
          %246 = vst [vmem:[%s236 + $0x8] sm:$0xff] 0.0
          %247 = vst [vmem:[%s236 + $0x10] sm:$0xff] 0.0
          %248 = vst [vmem:[%s236 + $0x18] sm:$0xff] 0.0
          %249 = vst [vmem:[%s236 + $0x20] sm:$0xff] 0.0
          %250 = vst [vmem:[%s236 + $0x28] sm:$0xff] 0.0
          %251 = vst [vmem:[%s236 + $0x30] sm:$0xff] 0.0
          %252 = vst [vmem:[%s236 + $0x38] sm:$0xff] 0.0
          %253 = vst [vmem:[%s236 + $0x40] sm:$0xff] 0.0
          %254 = vst [vmem:[%s236 + $0x48] sm:$0xff] 0.0
          %255 = vst [vmem:[%s236 + $0x50] sm:$0xff] 0.0
          %256 = vst [vmem:[%s236 + $0x58] sm:$0xff] 0.0
          %257 = vst [vmem:[%s236 + $0x60] sm:$0xff] 0.0
          %258 = vst [vmem:[%s236 + $0x68] sm:$0xff] 0.0
          %259 = vst [vmem:[%s236 + $0x70] sm:$0xff] 0.0
          %260 = vst [vmem:[%s236 + $0x78] sm:$0xff] 0.0
        $region40: #{tpu_custom_call.1} parent=27 // pred_fallthru
          _
        %v261 = vld [vmem:[%s211] sm:$0xff]
        %v262 = vld [vmem:[%s211 + $0x8] sm:$0xff]
        %v263 = vld [vmem:[%s202] sm:$0xff]
        %v264 = vld [vmem:[%s202 + $0x8] sm:$0xff]
        %s265 = scalar_lea.vmem %s202, 16 [#allocation2]
        %v266 = vld [vmem:[%s265] sm:$0xff]
        %v267 = vld [vmem:[%s265 + $0x8] sm:$0xff]
        %s268 = scalar_lea.vmem %s202, 32 [#allocation2]
        %v269 = vld [vmem:[%s268] sm:$0xff]
        %v270 = vld [vmem:[%s268 + $0x8] sm:$0xff]
        %s271 = scalar_lea.vmem %s202, 48 [#allocation2]
        %v272 = vld [vmem:[%s271] sm:$0xff]
        %v273 = vld [vmem:[%s271 + $0x8] sm:$0xff]
        %v274 = vmax.f32 %v263, %v266
        %v275 = vmax.f32 %v264, %v267
        %v276 = vmax.f32 %v274, %v269
        %v277 = vmax.f32 %v275, %v270
        %v278 = vmax.f32 %v276, %v272
        %v279 = vmax.f32 %v277, %v273
        %v280 = vsub.f32 %v263, %v278
        %v281 = vsub.f32 %v264, %v279
        %v282 = vmul.f32 %v280, 1.442695
        %v283 = vpow.pop %v282
        %v284 = vmul.f32 %v281, 1.442695
        %v285 = vpow.pop %v284
        %v286 = vsub.f32 %v266, %v278
        %v287 = vsub.f32 %v267, %v279
        %v288 = vmul.f32 %v286, 1.442695
        %v289 = vpow.pop %v288
        %v290 = vmul.f32 %v287, 1.442695
        %v291 = vpow.pop %v290
        %v292 = vsub.f32 %v269, %v278
        %v293 = vsub.f32 %v270, %v279
        %v294 = vmul.f32 %v292, 1.442695
        %v295 = vpow.pop %v294
        %v296 = vmul.f32 %v293, 1.442695
        %v297 = vpow.pop %v296
        %v298 = vsub.f32 %v272, %v278
        %v299 = vsub.f32 %v273, %v279
        %v300 = vmul.f32 %v298, 1.442695
        %v301 = vpow.pop %v300
        %v302 = vmul.f32 %v299, 1.442695
        %v303 = vpow.pop %v302
        %v304 = vadd.f32 %v283, %v289
        %v305 = vadd.f32 %v285, %v291
        %v306 = vadd.f32 %v304, %v295
        %v307 = vadd.f32 %v305, %v297
        %v308 = vadd.f32 %v306, %v301
        %v309 = vadd.f32 %v307, %v303
        %v310 = vrcp.pop %v308
        %v311 = vrcp.pop %v309
        %v312 = vmul.f32 %v308, %v310
        %v313 = vmul.f32 %v309, %v311
        %v314 = vsub.f32 2.0, %v312
        %v315 = vsub.f32 2.0, %v313
        %v316 = vmul.f32 %v310, %v314
        %v317 = vmul.f32 %v311, %v315
        %v318 = vlog2.pop %v308
        %v319 = vmul.f32 %v318, 0.6931472
        %v320 = vlog2.pop %v309
        %v321 = vmul.f32 %v320, 0.6931472
        %v322 = vadd.f32 %v278, %v319
        %v323 = vadd.f32 %v279, %v321
        %vm324 = vcmp.eq.s32.totalorder %v261, 0
        %vm325 = vcmp.eq.s32.totalorder %v262, 0
        %v326 = vsel %vm324, 1, 0
        %v327 = vsel %vm325, 1, 0
        %v328 = vcvt.s32.f32 %v326
        %v329 = vcvt.s32.f32 %v327
        %v330 = vmul.f32 %v283, %v316
        %v331 = vmul.f32 %v285, %v317
        %v332 = vmul.f32 %v328, %v330
        %v333 = vmul.f32 %v329, %v331
        %v334 = vld [vmem:[%s236] sm:$0xff]
        %v335 = vadd.f32 %v332, %v333
        %v336 = vadd.f32 %v334, %v335
        %337 = vst [vmem:[%s236] sm:$0xff] %v336
        %v338 = vld [vmem:[%s236 + $0x20] sm:$0xff]
        %v339 = vadd.f32 %v328, %v329
        %v340 = vadd.f32 %v338, %v339
        %341 = vst [vmem:[%s236 + $0x20] sm:$0xff] %v340
        %v342 = vld [vmem:[%s236 + $0x40] sm:$0xff]
        %v343 = vadd.f32 %v330, %v331
        %v344 = vadd.f32 %v342, %v343
        %345 = vst [vmem:[%s236 + $0x40] sm:$0xff] %v344
        %v346 = vmul.f32 %v328, %v263
        %v347 = vmul.f32 %v329, %v264
        %v348 = vsub.f32 %v322, %v346
        %v349 = vsub.f32 %v323, %v347
        %vm350 = vcmp.eq.s32.totalorder %v261, 1
        %vm351 = vcmp.eq.s32.totalorder %v262, 1
        %v352 = vsel %vm350, 1, 0
        %v353 = vsel %vm351, 1, 0
        %v354 = vcvt.s32.f32 %v352
        %v355 = vcvt.s32.f32 %v353
        %v356 = vmul.f32 %v289, %v316
        %v357 = vmul.f32 %v291, %v317
        %v358 = vmul.f32 %v354, %v356
        %v359 = vmul.f32 %v355, %v357
        %v360 = vld [vmem:[%s236 + $0x8] sm:$0xff]
        %v361 = vadd.f32 %v358, %v359
        %v362 = vadd.f32 %v360, %v361
        %363 = vst [vmem:[%s236 + $0x8] sm:$0xff] %v362
        %v364 = vld [vmem:[%s236 + $0x28] sm:$0xff]
        %v365 = vadd.f32 %v354, %v355
        %v366 = vadd.f32 %v364, %v365
        %367 = vst [vmem:[%s236 + $0x28] sm:$0xff] %v366
        %v368 = vld [vmem:[%s236 + $0x48] sm:$0xff]
        %v369 = vadd.f32 %v356, %v357
        %v370 = vadd.f32 %v368, %v369
        %371 = vst [vmem:[%s236 + $0x48] sm:$0xff] %v370
        %v372 = vmul.f32 %v354, %v266
        %v373 = vmul.f32 %v355, %v267
        %v374 = vsub.f32 %v348, %v372
        %v375 = vsub.f32 %v349, %v373
        %vm376 = vcmp.eq.s32.totalorder %v261, 2
        %vm377 = vcmp.eq.s32.totalorder %v262, 2
        %v378 = vsel %vm376, 1, 0
        %v379 = vsel %vm377, 1, 0
        %v380 = vcvt.s32.f32 %v378
        %v381 = vcvt.s32.f32 %v379
        %v382 = vmul.f32 %v295, %v316
        %v383 = vmul.f32 %v297, %v317
        %v384 = vmul.f32 %v380, %v382
        %v385 = vmul.f32 %v381, %v383
        %v386 = vld [vmem:[%s236 + $0x10] sm:$0xff]
        %v387 = vadd.f32 %v384, %v385
        %v388 = vadd.f32 %v386, %v387
        %389 = vst [vmem:[%s236 + $0x10] sm:$0xff] %v388
        %v390 = vld [vmem:[%s236 + $0x30] sm:$0xff]
        %v391 = vadd.f32 %v380, %v381
        %v392 = vadd.f32 %v390, %v391
        %393 = vst [vmem:[%s236 + $0x30] sm:$0xff] %v392
        %v394 = vld [vmem:[%s236 + $0x50] sm:$0xff]
        %v395 = vadd.f32 %v382, %v383
        %v396 = vadd.f32 %v394, %v395
        %397 = vst [vmem:[%s236 + $0x50] sm:$0xff] %v396
        %v398 = vmul.f32 %v380, %v269
        %v399 = vmul.f32 %v381, %v270
        %v400 = vsub.f32 %v374, %v398
        %v401 = vsub.f32 %v375, %v399
        %vm402 = vcmp.eq.s32.totalorder %v261, 3
        %vm403 = vcmp.eq.s32.totalorder %v262, 3
        %v404 = vsel %vm402, 1, 0
        %v405 = vsel %vm403, 1, 0
        %v406 = vcvt.s32.f32 %v404
        %v407 = vcvt.s32.f32 %v405
        %v408 = vmul.f32 %v301, %v316
        %v409 = vmul.f32 %v303, %v317
        %v410 = vmul.f32 %v406, %v408
        %v411 = vmul.f32 %v407, %v409
        %v412 = vld [vmem:[%s236 + $0x18] sm:$0xff]
        %v413 = vadd.f32 %v410, %v411
        %v414 = vadd.f32 %v412, %v413
        %415 = vst [vmem:[%s236 + $0x18] sm:$0xff] %v414
        %v416 = vld [vmem:[%s236 + $0x38] sm:$0xff]
        %v417 = vadd.f32 %v406, %v407
        %v418 = vadd.f32 %v416, %v417
        %419 = vst [vmem:[%s236 + $0x38] sm:$0xff] %v418
        %v420 = vld [vmem:[%s236 + $0x58] sm:$0xff]
        %v421 = vadd.f32 %v408, %v409
        %v422 = vadd.f32 %v420, %v421
        %423 = vst [vmem:[%s236 + $0x58] sm:$0xff] %v422
        %v424 = vmul.f32 %v406, %v272
        %v425 = vmul.f32 %v407, %v273
        %v426 = vsub.f32 %v400, %v424
        %v427 = vsub.f32 %v401, %v425
        %v428 = vld [vmem:[%s236 + $0x60] sm:$0xff]
        %v429 = vadd.f32 %v426, %v427
        %v430 = vadd.f32 %v428, %v429
        %431 = vst [vmem:[%s236 + $0x60] sm:$0xff] %v430
        %s432 = sand.u32 %s111, 1
        %s433 = scalar_lea.sflag [#allocation4], %s432
        %s434 = sand.u32 %s111, 1
        %s435 = smul.addr %s434, 128
        %s436 = scalar_lea.vmem [#allocation7], %s435
        // Predicated region
        $region41: #{tpu_custom_call.1} parent=27 // pred_check
          %p437 = pneg %p121
        $region42: #{tpu_custom_call.1} parent=27 // pred_check_branch
          %439 = sbr.rel (%p437) target = $region44
        $region43: #{tpu_custom_call.1} parent=27 // pred_region
          %s441 = ssub.s32 2048, 2048
          %442 = vsyncadd %s433, %s441
          %s443 = smul.addr %s28, 16
          %s444 = smul.addr %s27, 32
          %s445 = sadd.s32 %s443, %s444
          %s446 = smul.addr %s445, 128
          %s447 = scalar_lea.hbm %s2, %s446
          %s448 = sshll.u32 %s436, 4
          %s449 = int_to_ptr.vmem [resolvable:$true] %s448
          %454 = dma.vmem_to_hbm [thread:$0]  %s449, 2048, %s447, %s433, 128, 128, 8
        $region44: #{tpu_custom_call.1} parent=27 // pred_fallthru
          _
      $region28: #{tpu_custom_call.1} parent=5 // pred_fallthru
        _
      %p455 = scmp.le.s32.totalorder 2, %s17
      // Predicated region
      $region45: #{tpu_custom_call.1} parent=5 // pred_check
        %p456 = pneg %p455
      $region46: #{tpu_custom_call.1} parent=5 // pred_check_branch
        %458 = sbr.rel (%p456) target = $region48
      $region47: #{tpu_custom_call.1} parent=5 // pred_region
        %s459 = ssub.s32 %s17, 2
        // Predicated region
        $region49: #{tpu_custom_call.1} parent=47 // pred_check
          %p460 = pneg %p127
        $region50: #{tpu_custom_call.1} parent=47 // pred_check_branch
          %462 = sbr.rel (%p460) target = $region52
        $region51: #{tpu_custom_call.1} parent=47 // pred_region
          %s463 = sand.u32 %s112, 1
          %s464 = scalar_lea.sflag [#allocation4], %s463
          %s465 = sand.u32 %s112, 1
          %s466 = smul.addr %s465, 128
          %s467 = scalar_lea.vmem [#allocation7], %s466
          %468 = dma.done %s464, 2048
        $region52: #{tpu_custom_call.1} parent=47 // pred_fallthru
          _
      $region48: #{tpu_custom_call.1} parent=5 // pred_fallthru
        _
    $region6: #{tpu_custom_call.1} parent=1 // loop_footer
      %s21 = sadd.s32 1, %s17
    $region7: #{tpu_custom_call.1} parent=1 // loop_footer_branch
      %16 = sbr.rel target = $region3
    $region8: #{tpu_custom_call.1} parent=1 // loop_exit
      _
    %469 = vsyncpa [#allocation3], 1
    %s470 = scalar_lea.sflag [#allocation3], 1
    %471 = vsyncpa %s470, 1
    %472 = vsyncpa [#allocation6], 1
    %s473 = scalar_lea.sflag [#allocation6], 1
    %474 = vsyncpa %s473, 1
    %475 = vsyncpa [#allocation4], 1
    %s476 = scalar_lea.sflag [#allocation4], 1
    %477 = vsyncpa %s476, 1

</llo_original>
